<compile_context>
chip_gen: v6e
topology: v6e:2x2x1
jax: 0.10.0
libtpu: 0.0.40
codegen_flags: <defaults>
</compile_context>

<pallas_src>
import functools

import jax
import jax.numpy as jnp
from jax.experimental import pallas as pl
from jax.experimental.pallas import tpu as pltpu


# ---------------------------------------------------------------------------
# Fused kernel: conv3x3 + bias + ReLU + BN, twice, + residual — Nb samples/step
# ---------------------------------------------------------------------------

def _resblock_kernel(x_ref, w0_ref, w1_ref, ep_ref, out_ref, *, Nb, H, WC):
    """x_ref:  (Nb, H, WC)  packed NHWC samples (also the residual), f32
       w*_ref: (3, WC, WC)  banded conv matrices, one per kh tap (f32 or bf16)
       ep_ref: (6, WC)      rows = [b0, scale0, shift0, b1, scale1, shift1], f32
       out_ref:(Nb, H, WC)  lane-dense f32 output
    """
    x = x_ref[...]                       # (Nb, H, WC) f32
    ep = ep_ref[...]                     # (6, WC) f32
    mm_dtype = w0_ref.dtype              # f32 or bf16 matmul operands

    # Per-sample H boundary masks; built once per grid step, reused by both
    # stages (replaces the old per-step (H, H) iota shift matrices).
    row = jax.lax.broadcasted_iota(jnp.int32, (Nb, H, WC), 1)
    not_top = row != 0
    not_bot = row != H - 1

    def conv3x3(xin, w_ref):
        # Rows from above / below via XLU roll along the per-sample H axis;
        # masked boundary rows realize the 'same' zero padding along H.
        x_up = jnp.where(not_top, pltpu.roll(xin, shift=1, axis=1), 0.0)
        x_dn = jnp.where(not_bot, pltpu.roll(xin, shift=H - 1, axis=1), 0.0)

        def mm(a, w):
            # Batch folded into M: (Nb*H, WC) x (WC, WC) on the MXU,
            # f32 accumulation regardless of operand dtype.
            return jnp.dot(a.reshape(Nb * H, WC).astype(mm_dtype), w,
                           preferred_element_type=jnp.float32)

        acc = mm(x_up, w_ref[0]) + mm(xin, w_ref[1]) + mm(x_dn, w_ref[2])
        return acc.reshape(Nb, H, WC)

    def ep_row(i):                        # lane-dense epilogue row -> (1,1,WC)
        return ep[i:i + 1, :].reshape(1, 1, WC)

    # Stage 0: conv + bias -> ReLU -> BN (eval running stats).
    h = conv3x3(x, w0_ref)
    h = jnp.maximum(h + ep_row(0), 0.0) * ep_row(1) + ep_row(2)
    # TODO(synk): training-mode Dropout2d(p=0.3) not implemented; eval-mode
    # dropout is the identity, which is what this kernel computes.

    # Stage 1: conv + bias -> ReLU -> BN, then residual add.
    y = conv3x3(h, w1_ref)
    y = jnp.maximum(y + ep_row(3), 0.0) * ep_row(4) + ep_row(5)

    out_ref[...] = y + x


# ---------------------------------------------------------------------------
# Wrapper-side weight preparation (pay once per network, not per call)
# ---------------------------------------------------------------------------

def _band_weights(w_hwio, width):
    """(3, 3, Cin, Cout) HWIO taps -> (3, W*Cin, W*Cout) banded matrices.

    out[kh, ws*Cin+ci, wd*Cout+co] = w[kh, ws-wd+1, ci, co] if 0 <= ws-wd+1 < 3
    else 0 — the kw taps and the 'same' zero padding along W are folded into
    one dense matrix per kh row-tap.
    """
    kh_, kw_, cin, cout = w_hwio.shape
    ws = jnp.arange(width)[None, :, None]
    wd = jnp.arange(width)[None, None, :]
    kw = jnp.arange(kw_)[:, None, None]
    sel = (ws - wd + 1 == kw).astype(w_hwio.dtype)          # (3, W, W)
    m = jnp.einsum('ksd,hkio->hsido', sel, w_hwio)          # (3, W, Cin, W, Cout)
    return m.reshape(kh_, width * cin, width * cout)


def prepare_params(params, W, matmul_dtype=jnp.float32):
    """Banded conv matrices + lane-dense epilogue rows, ready for the kernel."""
    w0 = _band_weights(params["w0"].astype(jnp.float32), W).astype(matmul_dtype)
    w1 = _band_weights(params["w1"].astype(jnp.float32), W).astype(matmul_dtype)
    ep = jnp.stack([
        jnp.tile(params["b0"], W), jnp.tile(params["scale0"], W),
        jnp.tile(params["shift0"], W),
        jnp.tile(params["b1"], W), jnp.tile(params["scale1"], W),
        jnp.tile(params["shift1"], W),
    ], axis=0).astype(jnp.float32)                           # (6, W*C)
    return w0, w1, ep


# ---------------------------------------------------------------------------
# Packed-layout forward (no transposes; keep activations packed across layers)
# ---------------------------------------------------------------------------

@functools.partial(jax.jit, static_argnames=("steps",))
def resblock_forward_packed(x_packed, w0, w1, ep, steps=None):
    """Fused ResBlock on packed (N, H, W*C) activations."""
    N, H, WC = x_packed.shape
    if steps is None:
        # 2 parallel steps keep both v7x TensorCores busy; on single-TC
        # v5e/v6e a single bigger step (steps=1) is marginally better.
        steps = 2 if (N % 2 == 0 and N >= 2) else 1
    assert N % steps == 0
    Nb = N // steps

    kernel = functools.partial(_resblock_kernel, Nb=Nb, H=H, WC=WC)
    return pl.pallas_call(
        kernel,
        out_shape=jax.ShapeDtypeStruct((N, H, WC), jnp.float32),
        grid=(steps,),
        in_specs=[
            pl.BlockSpec((Nb, H, WC), lambda n: (n, 0, 0)),
            pl.BlockSpec((3, WC, WC), lambda n: (0, 0, 0)),   # VMEM-resident
            pl.BlockSpec((3, WC, WC), lambda n: (0, 0, 0)),   # VMEM-resident
            pl.BlockSpec((6, WC), lambda n: (0, 0)),          # VMEM-resident
        ],
        out_specs=pl.BlockSpec((Nb, H, WC), lambda n: (n, 0, 0)),
        compiler_params=pltpu.CompilerParams(
            dimension_semantics=("parallel",)),
    )(x_packed, w0, w1, ep)


# ---------------------------------------------------------------------------
# NCHW convenience wrapper matching the PyTorch module interface
# ---------------------------------------------------------------------------

@functools.partial(jax.jit, static_argnames=("matmul_dtype",))
def mid_forward(x_nchw, params, matmul_dtype=jnp.float32):
    """Mid.forward == ResBlock.forward (eval mode); NCHW in / NCHW out.

    Callers chaining many blocks should use prepare_params +
    resblock_forward_packed directly so the NCHW<->packed transposes and the
    weight banding are paid once per network rather than once per block.
    """
    N, C, H, W = x_nchw.shape
    w0, w1, ep = prepare_params(params, W, matmul_dtype=matmul_dtype)
    x_packed = jnp.transpose(x_nchw, (0, 2, 3, 1)).astype(jnp.float32)
    x_packed = x_packed.reshape(N, H, W * C)
    y_packed = resblock_forward_packed(x_packed, w0, w1, ep)
    y = y_packed.reshape(N, H, W, C)
    return jnp.transpose(y, (0, 3, 1, 2))                     # NHWC -> NCHW


# ---------------------------------------------------------------------------
# Parameter construction (deterministic, synthetic)
# ---------------------------------------------------------------------------

def make_params(key, in_channels, out_channels, eps=1e-5):
    ks = jax.random.split(key, 8)

    def conv_w(k, cin, cout):
        bound = 1.0 / jnp.sqrt(3.0 * 3.0 * cin)
        return jax.random.uniform(k, (3, 3, cin, cout), jnp.float32,
                                  -bound, bound)

    def conv_b(k, cin, cout):
        bound = 1.0 / jnp.sqrt(3.0 * 3.0 * cin)
        return jax.random.uniform(k, (cout,), jnp.float32, -bound, bound)

    def bn(kg, kb, c):
        gamma = 1.0 + 0.1 * jax.random.normal(kg, (c,), jnp.float32)
        beta = 0.1 * jax.random.normal(kb, (c,), jnp.float32)
        running_mean = 0.05 * jnp.arange(c, dtype=jnp.float32)
        running_var = 1.0 + 0.02 * jnp.arange(c, dtype=jnp.float32)
        scale = gamma / jnp.sqrt(running_var + eps)
        shift = beta - running_mean * scale
        return scale, shift

    scale0, shift0 = bn(ks[4], ks[5], out_channels)
    scale1, shift1 = bn(ks[6], ks[7], out_channels)
    return {
        "w0": conv_w(ks[0], in_channels, out_channels),
        "b0": conv_b(ks[1], in_channels, out_channels),
        "w1": conv_w(ks[2], out_channels, out_channels),
        "b1": conv_b(ks[3], out_channels, out_channels),
        "scale0": scale0, "shift0": shift0,
        "scale1": scale1, "shift1": shift1,
    }


# ---------------------------------------------------------------------------
# Plain-JAX reference (for correctness check)
# ---------------------------------------------------------------------------

def ref_forward(x_nchw, p):
    x = jnp.transpose(x_nchw, (0, 2, 3, 1)).astype(jnp.float32)

    def stage(h, w, b, scale, shift):
        y = jax.lax.conv_general_dilated(
            h, w, window_strides=(1, 1), padding="SAME",
            dimension_numbers=("NHWC", "HWIO", "NHWC"))
        y = jnp.maximum(y + b, 0.0)
        return y * scale + shift

    residual = x
    h = stage(x, p["w0"], p["b0"], p["scale0"], p["shift0"])
    y = stage(h, p["w1"], p["b1"], p["scale1"], p["shift1"]) + residual
    return jnp.transpose(y, (0, 3, 1, 2))


# ---------------------------------------------------------------------------

if __name__ == "__main__":
    # Mid(in_channels=C, out_channels=C, ...); W*C = 128 -> lane-dense packing.
    N, C, H, W = 4, 8, 16, 16
    key = jax.random.PRNGKey(0)
    kx, kp = jax.random.split(key)

    x = jax.random.normal(kx, (N, C, H, W), jnp.float32)   # NCHW like PyTorch
    params = make_params(kp, C, C)

    ref = ref_forward(x, params)

    # f32 matmul path: bit-accurate vs the f32 reference.
    out_f32 = jax.block_until_ready(mid_forward(x, params))
    assert out_f32.shape == (N, C, H, W)
    assert jnp.allclose(out_f32, ref, atol=1e-4, rtol=1e-4), (
        f"f32 path max abs err {jnp.max(jnp.abs(out_f32 - ref))}")

    # bf16 matmul path (v6e/v7x MXU-native): looser tolerance, f32 epilogue.
    out_bf16 = jax.block_until_ready(
        mid_forward(x, params, matmul_dtype=jnp.bfloat16))
    assert out_bf16.shape == (N, C, H, W)
    assert jnp.allclose(out_bf16, ref, atol=5e-2, rtol=5e-2), (
        f"bf16 path max abs err {jnp.max(jnp.abs(out_bf16 - ref))}")

    print("KERNEL_OK")
</pallas_src>

<mosaic_0001>
module attributes {stable_mosaic.version = 11 : i64} {
  func.func @_resblock_kernel(%arg0: i32, %arg1: memref<2x16x128xf32, #tpu.memory_space<vmem>>, %arg2: memref<3x128x128xf32, #tpu.memory_space<vmem>>, %arg3: memref<3x128x128xf32, #tpu.memory_space<vmem>>, %arg4: memref<6x128xf32, #tpu.memory_space<vmem>>, %arg5: memref<2x16x128xf32, #tpu.memory_space<vmem>>) attributes {dimension_semantics = [#tpu.dimension_semantics<parallel>], iteration_bounds = array<i64: 2>, scalar_prefetch = 0 : i64, scratch_operands = 0 : i64, tpu.core_type = #tpu.core_type<tc>, window_params = [{transform_indices = @transform_0, window_bounds = array<i64: 2, 16, 128>}, {pipeline_mode = #tpu.pipeline_mode<synchronous>, transform_indices = @transform_1, window_bounds = array<i64: 3, 128, 128>}, {pipeline_mode = #tpu.pipeline_mode<synchronous>, transform_indices = @transform_2, window_bounds = array<i64: 3, 128, 128>}, {pipeline_mode = #tpu.pipeline_mode<synchronous>, transform_indices = @transform_3, window_bounds = array<i64: 6, 128>}, {transform_indices = @transform_4, window_bounds = array<i64: 2, 16, 128>}]} {
    %c0 = arith.constant 0 : index
    %c0_0 = arith.constant 0 : index
    %c0_1 = arith.constant 0 : index
    %0 = vector.load %arg1[%c0, %c0_0, %c0_1] : memref<2x16x128xf32, #tpu.memory_space<vmem>>, vector<2x16x128xf32>
    %c0_2 = arith.constant 0 : index
    %c0_3 = arith.constant 0 : index
    %1 = vector.load %arg4[%c0_2, %c0_3] : memref<6x128xf32, #tpu.memory_space<vmem>>, vector<6x128xf32>
    %2 = tpu.iota {dimensions = array<i32: 1>} : vector<2x16x128xi32>
    %c0_i32 = arith.constant 0 : i32
    %3 = vector.broadcast %c0_i32 : i32 to vector<2x16x128xi32>
    %4 = arith.cmpi ne, %2, %3 : vector<2x16x128xi32>
    %c15_i32 = arith.constant 15 : i32
    %5 = vector.broadcast %c15_i32 : i32 to vector<2x16x128xi32>
    %6 = arith.cmpi ne, %2, %5 : vector<2x16x128xi32>
    %c1_i32 = arith.constant 1 : i32
    %7 = tpu.dynamic_rotate %0 by %c1_i32 dim 1 : vector<2x16x128xf32>, i32 -> vector<2x16x128xf32>
    %cst = arith.constant 0.000000e+00 : f32
    %8 = vector.broadcast %cst : f32 to vector<2x16x128xf32>
    %9 = arith.select %4, %7, %8 : vector<2x16x128xi1>, vector<2x16x128xf32>
    %c15_i32_4 = arith.constant 15 : i32
    %10 = tpu.dynamic_rotate %0 by %c15_i32_4 dim 1 : vector<2x16x128xf32>, i32 -> vector<2x16x128xf32>
    %cst_5 = arith.constant 0.000000e+00 : f32
    %11 = vector.broadcast %cst_5 : f32 to vector<2x16x128xf32>
    %12 = arith.select %6, %10, %11 : vector<2x16x128xi1>, vector<2x16x128xf32>
    %c0_6 = arith.constant 0 : index
    %c0_7 = arith.constant 0 : index
    %c0_8 = arith.constant 0 : index
    %13 = vector.load %arg2[%c0_6, %c0_7, %c0_8] : memref<3x128x128xf32, #tpu.memory_space<vmem>>, vector<1x128x128xf32>
    %14 = vector.shape_cast %13 : vector<1x128x128xf32> to vector<128x128xf32>
    %15 = vector.shape_cast %9 : vector<2x16x128xf32> to vector<32x128xf32>
    %cst_9 = arith.constant dense<0.000000e+00> : vector<32x128xf32>
    %16 = tpu.matmul %15, %14, %cst_9 {dimension_numbers = #tpu.dot_dimension_numbers<[1], [0], [0], [1], [0, 0, 1, 1], [], []>} : vector<32x128xf32>, vector<128x128xf32>, vector<32x128xf32> -> vector<32x128xf32>
    %c1 = arith.constant 1 : index
    %c0_10 = arith.constant 0 : index
    %c0_11 = arith.constant 0 : index
    %17 = vector.load %arg2[%c1, %c0_10, %c0_11] : memref<3x128x128xf32, #tpu.memory_space<vmem>>, vector<1x128x128xf32>
    %18 = vector.shape_cast %17 : vector<1x128x128xf32> to vector<128x128xf32>
    %19 = vector.shape_cast %0 : vector<2x16x128xf32> to vector<32x128xf32>
    %cst_12 = arith.constant dense<0.000000e+00> : vector<32x128xf32>
    %20 = tpu.matmul %19, %18, %cst_12 {dimension_numbers = #tpu.dot_dimension_numbers<[1], [0], [0], [1], [0, 0, 1, 1], [], []>} : vector<32x128xf32>, vector<128x128xf32>, vector<32x128xf32> -> vector<32x128xf32>
    %21 = arith.addf %16, %20 : vector<32x128xf32>
    %c2 = arith.constant 2 : index
    %c0_13 = arith.constant 0 : index
    %c0_14 = arith.constant 0 : index
    %22 = vector.load %arg2[%c2, %c0_13, %c0_14] : memref<3x128x128xf32, #tpu.memory_space<vmem>>, vector<1x128x128xf32>
    %23 = vector.shape_cast %22 : vector<1x128x128xf32> to vector<128x128xf32>
    %24 = vector.shape_cast %12 : vector<2x16x128xf32> to vector<32x128xf32>
    %cst_15 = arith.constant dense<0.000000e+00> : vector<32x128xf32>
    %25 = tpu.matmul %24, %23, %cst_15 {dimension_numbers = #tpu.dot_dimension_numbers<[1], [0], [0], [1], [0, 0, 1, 1], [], []>} : vector<32x128xf32>, vector<128x128xf32>, vector<32x128xf32> -> vector<32x128xf32>
    %26 = arith.addf %21, %25 : vector<32x128xf32>
    %27 = vector.shape_cast %26 : vector<32x128xf32> to vector<2x16x128xf32>
    %28 = vector.extract_strided_slice %1 {offsets = [0, 0], sizes = [1, 128], strides = [1, 1]} : vector<6x128xf32> to vector<1x128xf32>
    %29 = vector.shape_cast %28 : vector<1x128xf32> to vector<1x1x128xf32>
    %30 = vector.broadcast %29 : vector<1x1x128xf32> to vector<2x16x128xf32>
    %31 = arith.addf %27, %30 : vector<2x16x128xf32>
    %cst_16 = arith.constant 0.000000e+00 : f32
    %32 = vector.broadcast %cst_16 : f32 to vector<2x16x128xf32>
    %33 = arith.maximumf %31, %32 : vector<2x16x128xf32>
    %34 = vector.extract_strided_slice %1 {offsets = [1, 0], sizes = [1, 128], strides = [1, 1]} : vector<6x128xf32> to vector<1x128xf32>
    %35 = vector.shape_cast %34 : vector<1x128xf32> to vector<1x1x128xf32>
    %36 = vector.broadcast %35 : vector<1x1x128xf32> to vector<2x16x128xf32>
    %37 = arith.mulf %33, %36 : vector<2x16x128xf32>
    %38 = vector.extract_strided_slice %1 {offsets = [2, 0], sizes = [1, 128], strides = [1, 1]} : vector<6x128xf32> to vector<1x128xf32>
    %39 = vector.shape_cast %38 : vector<1x128xf32> to vector<1x1x128xf32>
    %40 = vector.broadcast %39 : vector<1x1x128xf32> to vector<2x16x128xf32>
    %41 = arith.addf %37, %40 : vector<2x16x128xf32>
    %c1_i32_17 = arith.constant 1 : i32
    %42 = tpu.dynamic_rotate %41 by %c1_i32_17 dim 1 : vector<2x16x128xf32>, i32 -> vector<2x16x128xf32>
    %cst_18 = arith.constant 0.000000e+00 : f32
    %43 = vector.broadcast %cst_18 : f32 to vector<2x16x128xf32>
    %44 = arith.select %4, %42, %43 : vector<2x16x128xi1>, vector<2x16x128xf32>
    %c15_i32_19 = arith.constant 15 : i32
    %45 = tpu.dynamic_rotate %41 by %c15_i32_19 dim 1 : vector<2x16x128xf32>, i32 -> vector<2x16x128xf32>
    %cst_20 = arith.constant 0.000000e+00 : f32
    %46 = vector.broadcast %cst_20 : f32 to vector<2x16x128xf32>
    %47 = arith.select %6, %45, %46 : vector<2x16x128xi1>, vector<2x16x128xf32>
    %c0_21 = arith.constant 0 : index
    %c0_22 = arith.constant 0 : index
    %c0_23 = arith.constant 0 : index
    %48 = vector.load %arg3[%c0_21, %c0_22, %c0_23] : memref<3x128x128xf32, #tpu.memory_space<vmem>>, vector<1x128x128xf32>
    %49 = vector.shape_cast %48 : vector<1x128x128xf32> to vector<128x128xf32>
    %50 = vector.shape_cast %44 : vector<2x16x128xf32> to vector<32x128xf32>
    %cst_24 = arith.constant dense<0.000000e+00> : vector<32x128xf32>
    %51 = tpu.matmul %50, %49, %cst_24 {dimension_numbers = #tpu.dot_dimension_numbers<[1], [0], [0], [1], [0, 0, 1, 1], [], []>} : vector<32x128xf32>, vector<128x128xf32>, vector<32x128xf32> -> vector<32x128xf32>
    %c1_25 = arith.constant 1 : index
    %c0_26 = arith.constant 0 : index
    %c0_27 = arith.constant 0 : index
    %52 = vector.load %arg3[%c1_25, %c0_26, %c0_27] : memref<3x128x128xf32, #tpu.memory_space<vmem>>, vector<1x128x128xf32>
    %53 = vector.shape_cast %52 : vector<1x128x128xf32> to vector<128x128xf32>
    %54 = vector.shape_cast %41 : vector<2x16x128xf32> to vector<32x128xf32>
    %cst_28 = arith.constant dense<0.000000e+00> : vector<32x128xf32>
    %55 = tpu.matmul %54, %53, %cst_28 {dimension_numbers = #tpu.dot_dimension_numbers<[1], [0], [0], [1], [0, 0, 1, 1], [], []>} : vector<32x128xf32>, vector<128x128xf32>, vector<32x128xf32> -> vector<32x128xf32>
    %56 = arith.addf %51, %55 : vector<32x128xf32>
    %c2_29 = arith.constant 2 : index
    %c0_30 = arith.constant 0 : index
    %c0_31 = arith.constant 0 : index
    %57 = vector.load %arg3[%c2_29, %c0_30, %c0_31] : memref<3x128x128xf32, #tpu.memory_space<vmem>>, vector<1x128x128xf32>
    %58 = vector.shape_cast %57 : vector<1x128x128xf32> to vector<128x128xf32>
    %59 = vector.shape_cast %47 : vector<2x16x128xf32> to vector<32x128xf32>
    %cst_32 = arith.constant dense<0.000000e+00> : vector<32x128xf32>
    %60 = tpu.matmul %59, %58, %cst_32 {dimension_numbers = #tpu.dot_dimension_numbers<[1], [0], [0], [1], [0, 0, 1, 1], [], []>} : vector<32x128xf32>, vector<128x128xf32>, vector<32x128xf32> -> vector<32x128xf32>
    %61 = arith.addf %56, %60 : vector<32x128xf32>
    %62 = vector.shape_cast %61 : vector<32x128xf32> to vector<2x16x128xf32>
    %63 = vector.extract_strided_slice %1 {offsets = [3, 0], sizes = [1, 128], strides = [1, 1]} : vector<6x128xf32> to vector<1x128xf32>
    %64 = vector.shape_cast %63 : vector<1x128xf32> to vector<1x1x128xf32>
    %65 = vector.broadcast %64 : vector<1x1x128xf32> to vector<2x16x128xf32>
    %66 = arith.addf %62, %65 : vector<2x16x128xf32>
    %cst_33 = arith.constant 0.000000e+00 : f32
    %67 = vector.broadcast %cst_33 : f32 to vector<2x16x128xf32>
    %68 = arith.maximumf %66, %67 : vector<2x16x128xf32>
    %69 = vector.extract_strided_slice %1 {offsets = [4, 0], sizes = [1, 128], strides = [1, 1]} : vector<6x128xf32> to vector<1x128xf32>
    %70 = vector.shape_cast %69 : vector<1x128xf32> to vector<1x1x128xf32>
    %71 = vector.broadcast %70 : vector<1x1x128xf32> to vector<2x16x128xf32>
    %72 = arith.mulf %68, %71 : vector<2x16x128xf32>
    %73 = vector.extract_strided_slice %1 {offsets = [5, 0], sizes = [1, 128], strides = [1, 1]} : vector<6x128xf32> to vector<1x128xf32>
    %74 = vector.shape_cast %73 : vector<1x128xf32> to vector<1x1x128xf32>
    %75 = vector.broadcast %74 : vector<1x1x128xf32> to vector<2x16x128xf32>
    %76 = arith.addf %72, %75 : vector<2x16x128xf32>
    %77 = arith.addf %76, %0 : vector<2x16x128xf32>
    %c0_34 = arith.constant 0 : index
    %c0_35 = arith.constant 0 : index
    %c0_36 = arith.constant 0 : index
    %78 = vector.load %arg5[%c0_34, %c0_35, %c0_36] : memref<2x16x128xf32, #tpu.memory_space<vmem>>, vector<2x16x128xf32>
    tpu.vector_store %arg5[%c0_34, %c0_35, %c0_36], %77 {strides = array<i32>} : memref<2x16x128xf32, #tpu.memory_space<vmem>>, vector<2x16x128xf32>,
    return
  }
  func.func @transform_0(%arg0: i32) -> (i32, i32, i32) {
    %c0_i32 = arith.constant 0 : i32
    %c0_i32_0 = arith.constant 0 : i32
    %c0_i32_1 = arith.constant 0 : i32
    return %arg0, %c0_i32, %c0_i32_0 : i32, i32, i32
  }
  func.func @transform_1(%arg0: i32) -> (i32, i32, i32) {
    %c0_i32 = arith.constant 0 : i32
    %c0_i32_0 = arith.constant 0 : i32
    %c0_i32_1 = arith.constant 0 : i32
    %c0_i32_2 = arith.constant 0 : i32
    return %c0_i32, %c0_i32_0, %c0_i32_1 : i32, i32, i32
  }
  func.func @transform_2(%arg0: i32) -> (i32, i32, i32) {
    %c0_i32 = arith.constant 0 : i32
    %c0_i32_0 = arith.constant 0 : i32
    %c0_i32_1 = arith.constant 0 : i32
    %c0_i32_2 = arith.constant 0 : i32
    return %c0_i32, %c0_i32_0, %c0_i32_1 : i32, i32, i32
  }
  func.func @transform_3(%arg0: i32) -> (i32, i32) {
    %c0_i32 = arith.constant 0 : i32
    %c0_i32_0 = arith.constant 0 : i32
    %c0_i32_1 = arith.constant 0 : i32
    return %c0_i32, %c0_i32_0 : i32, i32
  }
  func.func @transform_4(%arg0: i32) -> (i32, i32, i32) {
    %c0_i32 = arith.constant 0 : i32
    %c0_i32_0 = arith.constant 0 : i32
    %c0_i32_1 = arith.constant 0 : i32
    return %arg0, %c0_i32, %c0_i32_0 : i32, i32, i32
  }
}

</mosaic_0001>

<llo_original>
// kernel: resblock_forward_packed.1
$region0: #{resblock_forward_packed.1}
  #allocation0 [shape = 'u32[]', space=smem, size = 0x4, offset = 0x4, fixed_abs, tag = 'smem constant byte address 0x4 - core index']
  #allocation1 [shape = 'u32[144,128]{1,0:T(1,128)}', space=vmem, size = 0x12000, scoped, tag = 'internal scratch']
  %s0 = inlined_call_operand.hbm [shape: f32[4,16,128], index: 0, kind: input, shape index: {}]
  %s1 = inlined_call_operand.hbm [shape: f32[3,128,128], index: 1, kind: input, shape index: {}]
  %s2 = inlined_call_operand.hbm [shape: f32[3,128,128], index: 2, kind: input, shape index: {}]
  %s3 = inlined_call_operand.hbm [shape: f32[6,128], index: 3, kind: input, shape index: {}]
  %s4 = inlined_call_operand.hbm [shape: f32[4,16,128], index: 4, kind: output, shape index: {}]
  %s5 = sld [smem:[#allocation0]]
  $region65: #{resblock_forward_packed.1} parent=0
    _
  %s7 = ssub.s32 1, %s5
  %s8 = scalar_select 0, %s7, %s5
  $region1: #{resblock_forward_packed.1} parent=0
    #allocation2 [shape = 'u8[32768]{0}', space=vmem, size = 0x8000, scoped, tag = 'input window, operand 0']
    #allocation3 [shape = 's32[2]{0}', space=sflag, size = 0x8, scoped, tag = 'scoped memory for resblock_forward_packed.1']
    #allocation4 [shape = 's32[2]{0}', space=sflag, size = 0x8, scoped, tag = 'scoped memory for resblock_forward_packed.1']
    #allocation5 [shape = 'u8[196608]{0}', space=vmem, size = 0x30000, scoped, tag = 'input window, operand 1, single buffered']
    #allocation6 [shape = 's32[1]{0}', space=sflag, size = 0x4, scoped, tag = 'scoped memory for resblock_forward_packed.1']
    #allocation7 [shape = 'u8[196608]{0}', space=vmem, size = 0x30000, scoped, tag = 'input window, operand 2, single buffered']
    #allocation8 [shape = 'u8[4096]{0}', space=vmem, size = 0x1000, scoped, tag = 'input window, operand 3, single buffered']
    #allocation9 [shape = 's32[1]{0}', space=sflag, size = 0x4, scoped, tag = 'scoped memory for resblock_forward_packed.1']
    #allocation10 [shape = 'u8[32768]{0}', space=vmem, size = 0x8000, scoped, tag = 'output window, operand 0']
    %9 = vsyncpa [#allocation3], 0
    %s10 = scalar_lea.sflag [#allocation3], 1
    %11 = vsyncpa %s10, 0
    %12 = vsyncpa [#allocation6], 0
    %13 = vsyncpa [#allocation9], 0
    %14 = vsyncpa [#allocation4], 0
    %s15 = scalar_lea.sflag [#allocation4], 1
    %16 = vsyncpa %s15, 0
    loop: start=0, step=1, limit=4
    $region2: #{resblock_forward_packed.1} parent=1 // loop_pre_header
      _
    $region3: #{resblock_forward_packed.1} parent=1 // loop_header
      %s18 = sphi 0, %s22
      %p19 = scmp.ge.s32.totalorder %s18, 4
      %s28 = sphi 0, %s30
      %s31 = sphi 0, %s28
      %s32 = sphi 0, %s31
      %s48 = sphi 0, %s32
      %s52 = sphi 0, %s52
      %s54 = sphi 0, %s52
      %s55 = sphi 0, %s54
      %s69 = sphi 0, %s55
      %s73 = sphi 0, %s73
      %s75 = sphi 0, %s73
      %s76 = sphi 0, %s75
      %s90 = sphi 0, %s76
      %s94 = sphi 0, %s94
      %s96 = sphi 0, %s94
      %s97 = sphi 0, %s96
      %s111 = sphi 0, %s97
      %s117 = sphi 0, %s119
      %s120 = sphi 0, %s117
      %s121 = sphi 0, %s120
      %s137 = sphi 0, %s121
    $region4: #{resblock_forward_packed.1} parent=1 // loop_header_branch
      %21 = sbr.rel (%p19) target = $region8
    $region5: #{resblock_forward_packed.1} parent=1 // loop_body
      %s23 = ssub.s32 %s18, 1
      %s24 = ssub.s32 %s18, 2
      %s25 = sadd.s32 %s18, 1
      %s26 = ssub.s32 %s18, %s25
      %p27 = scmp.eq.s32.totalorder %s26, 0
      %s29 = sadd.s32 %s28, 1
      %s30 = scalar_select %p27, %s28, %s29
      %p33 = pneg %p27
      %p34 = scmp.eq.s32.totalorder %s18, 1
      %p35 = por %p33, %p34
      %p36 = scmp.ne.s32.totalorder %s28, %s31
      %p37 = scmp.eq.s32.totalorder %s18, 0
      %p38 = por %p36, %p37
      %p39 = scmp.ne.s32.totalorder %s28, %s31
      %p40 = scmp.eq.s32.totalorder %s23, 1
      %p41 = por %p39, %p40
      %p42 = scmp.ne.s32.totalorder %s31, %s32
      %p43 = scmp.eq.s32.totalorder %s23, 0
      %p44 = por %p42, %p43
      %p45 = scmp.ne.s32.totalorder %s31, %s32
      %p46 = scmp.eq.s32.totalorder %s24, 1
      %p47 = por %p45, %p46
      %p49 = scmp.ne.s32.totalorder %s32, %s48
      %p50 = scmp.eq.s32.totalorder %s24, 0
      %p51 = por %p49, %p50
      %s53 = sadd.s32 %s52, 1
      %p56 = scmp.eq.s32.totalorder %s18, 1
      %p57 = scmp.ne.s32.totalorder %s52, %s54
      %p58 = scmp.eq.s32.totalorder %s18, 0
      %p59 = por %p57, %p58
      %p60 = scmp.ne.s32.totalorder %s52, %s54
      %p61 = scmp.eq.s32.totalorder %s23, 1
      %p62 = por %p60, %p61
      %p63 = scmp.ne.s32.totalorder %s54, %s55
      %p64 = scmp.eq.s32.totalorder %s23, 0
      %p65 = por %p63, %p64
      %p66 = scmp.ne.s32.totalorder %s54, %s55
      %p67 = scmp.eq.s32.totalorder %s24, 1
      %p68 = por %p66, %p67
      %p70 = scmp.ne.s32.totalorder %s55, %s69
      %p71 = scmp.eq.s32.totalorder %s24, 0
      %p72 = por %p70, %p71
      %s74 = sadd.s32 %s73, 1
      %p77 = scmp.eq.s32.totalorder %s18, 1
      %p78 = scmp.ne.s32.totalorder %s73, %s75
      %p79 = scmp.eq.s32.totalorder %s18, 0
      %p80 = por %p78, %p79
      %p81 = scmp.ne.s32.totalorder %s73, %s75
      %p82 = scmp.eq.s32.totalorder %s23, 1
      %p83 = por %p81, %p82
      %p84 = scmp.ne.s32.totalorder %s75, %s76
      %p85 = scmp.eq.s32.totalorder %s23, 0
      %p86 = por %p84, %p85
      %p87 = scmp.ne.s32.totalorder %s75, %s76
      %p88 = scmp.eq.s32.totalorder %s24, 1
      %p89 = por %p87, %p88
      %p91 = scmp.ne.s32.totalorder %s76, %s90
      %p92 = scmp.eq.s32.totalorder %s24, 0
      %p93 = por %p91, %p92
      %s95 = sadd.s32 %s94, 1
      %p98 = scmp.eq.s32.totalorder %s18, 1
      %p99 = scmp.ne.s32.totalorder %s94, %s96
      %p100 = scmp.eq.s32.totalorder %s18, 0
      %p101 = por %p99, %p100
      %p102 = scmp.ne.s32.totalorder %s94, %s96
      %p103 = scmp.eq.s32.totalorder %s23, 1
      %p104 = por %p102, %p103
      %p105 = scmp.ne.s32.totalorder %s96, %s97
      %p106 = scmp.eq.s32.totalorder %s23, 0
      %p107 = por %p105, %p106
      %p108 = scmp.ne.s32.totalorder %s96, %s97
      %p109 = scmp.eq.s32.totalorder %s24, 1
      %p110 = por %p108, %p109
      %p112 = scmp.ne.s32.totalorder %s97, %s111
      %p113 = scmp.eq.s32.totalorder %s24, 0
      %p114 = por %p112, %p113
      %s115 = ssub.s32 %s18, %s25
      %p116 = scmp.eq.s32.totalorder %s115, 0
      %s118 = sadd.s32 %s117, 1
      %s119 = scalar_select %p116, %s117, %s118
      %p122 = pneg %p116
      %p123 = scmp.eq.s32.totalorder %s18, 1
      %p124 = por %p122, %p123
      %p125 = scmp.ne.s32.totalorder %s117, %s120
      %p126 = scmp.eq.s32.totalorder %s18, 0
      %p127 = por %p125, %p126
      %p128 = scmp.ne.s32.totalorder %s117, %s120
      %p129 = scmp.eq.s32.totalorder %s23, 1
      %p130 = por %p128, %p129
      %p131 = scmp.ne.s32.totalorder %s120, %s121
      %p132 = scmp.eq.s32.totalorder %s23, 0
      %p133 = por %p131, %p132
      %p134 = scmp.ne.s32.totalorder %s120, %s121
      %p135 = scmp.eq.s32.totalorder %s24, 1
      %p136 = por %p134, %p135
      %p138 = scmp.ne.s32.totalorder %s121, %s137
      %p139 = scmp.eq.s32.totalorder %s24, 0
      %p140 = por %p138, %p139
      %p141 = scmp.le.s32.totalorder 1, %s18
      %p142 = scmp.lt.s32.totalorder %s18, 3
      %p143 = pnand %p141, %p142
      %p144 = pneg %p143
      // Predicated region
      $region9: #{resblock_forward_packed.1} parent=5 // pred_check
        _
      $region10: #{resblock_forward_packed.1} parent=5 // pred_check_branch
        %146 = sbr.rel (%p143) target = $region12
      $region11: #{resblock_forward_packed.1} parent=5 // pred_region
        %s147 = ssub.s32 %s18, 1
        // Predicated region
        $region13: #{resblock_forward_packed.1} parent=11 // pred_check
          %p148 = pneg %p65
        $region14: #{resblock_forward_packed.1} parent=11 // pred_check_branch
          %150 = sbr.rel (%p148) target = $region16
        $region15: #{resblock_forward_packed.1} parent=11 // pred_region
          %s152 = ssub.s32 6144, 6144
          %153 = vsyncadd [#allocation6], %s152
          %s154 = sshll.u32 [#allocation5], 4
          %s155 = int_to_ptr.vmem [resolvable:$true] %s154
          %160 = dma.hbm_to_vmem [thread:$0]  %s1, 6144, %s155, [#allocation6], 128, 128, 8
        $region16: #{resblock_forward_packed.1} parent=11 // pred_fallthru
          _
        // Predicated region
        $region17: #{resblock_forward_packed.1} parent=11 // pred_check
          %p161 = pneg %p86
        $region18: #{resblock_forward_packed.1} parent=11 // pred_check_branch
          %163 = sbr.rel (%p161) target = $region20
        $region19: #{resblock_forward_packed.1} parent=11 // pred_region
          %s165 = ssub.s32 6144, 6144
          %166 = vsyncadd [#allocation6], %s165
          %s167 = sshll.u32 [#allocation7], 4
          %s168 = int_to_ptr.vmem [resolvable:$true] %s167
          %173 = dma.hbm_to_vmem [thread:$0]  %s2, 6144, %s168, [#allocation6], 128, 128, 8
        $region20: #{resblock_forward_packed.1} parent=11 // pred_fallthru
          _
        // Predicated region
        $region21: #{resblock_forward_packed.1} parent=11 // pred_check
          %p174 = pneg %p107
        $region22: #{resblock_forward_packed.1} parent=11 // pred_check_branch
          %176 = sbr.rel (%p174) target = $region24
        $region23: #{resblock_forward_packed.1} parent=11 // pred_region
          %s178 = ssub.s32 128, 128
          %179 = vsyncadd [#allocation9], %s178
          %s181 = sshll.u32 [#allocation8], 4
          %s182 = int_to_ptr.vmem [resolvable:$true] %s181
          %184 = dma.hbm_to_vmem [thread:$0]  %s3, 128, %s182, [#allocation9]
        $region24: #{resblock_forward_packed.1} parent=11 // pred_fallthru
          _
      $region12: #{resblock_forward_packed.1} parent=5 // pred_fallthru
        _
      %p185 = scmp.lt.s32.totalorder %s18, 2
      // Predicated region
      $region25: #{resblock_forward_packed.1} parent=5 // pred_check
        %p186 = pneg %p185
      $region26: #{resblock_forward_packed.1} parent=5 // pred_check_branch
        %188 = sbr.rel (%p186) target = $region28
      $region27: #{resblock_forward_packed.1} parent=5 // pred_region
        // Predicated region
        $region29: #{resblock_forward_packed.1} parent=27 // pred_check
          %p189 = pneg %p38
        $region30: #{resblock_forward_packed.1} parent=27 // pred_check_branch
          %191 = sbr.rel (%p189) target = $region32
        $region31: #{resblock_forward_packed.1} parent=27 // pred_region
          %s192 = sand.u32 %s28, 1
          %s193 = scalar_lea.sflag [#allocation3], %s192
          %s194 = sand.u32 %s28, 1
          %s195 = smul.addr %s194, 32
          %s196 = scalar_lea.vmem [#allocation2], %s195
          %s197 = smul.u32 2, %s18
          %s199 = ssub.s32 512, 512
          %200 = vsyncadd %s193, %s199
          %s201 = smul.addr %s197, 2
          %s202 = smul.addr %s201, 128
          %s203 = scalar_lea.hbm %s0, %s202
          %s204 = sshll.u32 %s196, 4
          %s205 = int_to_ptr.vmem [resolvable:$true] %s204
          %210 = dma.hbm_to_vmem [thread:$0]  %s203, 512, %s205, %s193, 128, 128, 8
        $region32: #{resblock_forward_packed.1} parent=27 // pred_fallthru
          _
      $region28: #{resblock_forward_packed.1} parent=5 // pred_fallthru
        _
      %p211 = scmp.le.s32.totalorder 1, %s18
      %p212 = scmp.lt.s32.totalorder %s18, 3
      %p213 = pnand %p211, %p212
      %p214 = pneg %p213
      // Predicated region
      $region33: #{resblock_forward_packed.1} parent=5 // pred_check
        _
      $region34: #{resblock_forward_packed.1} parent=5 // pred_check_branch
        %216 = sbr.rel (%p213) target = $region36
      $region35: #{resblock_forward_packed.1} parent=5 // pred_region
        %s217 = ssub.s32 %s18, 1
        %s218 = sand.u32 %s31, 1
        %s219 = scalar_lea.sflag [#allocation3], %s218
        %s220 = sand.u32 %s31, 1
        %s221 = smul.addr %s220, 32
        %s222 = scalar_lea.vmem [#allocation2], %s221
        // Predicated region
        $region37: #{resblock_forward_packed.1} parent=35 // pred_check
          %p223 = pneg %p44
        $region38: #{resblock_forward_packed.1} parent=35 // pred_check_branch
          %225 = sbr.rel (%p223) target = $region40
        $region39: #{resblock_forward_packed.1} parent=35 // pred_region
          %226 = dma.done %s219, 512
        $region40: #{resblock_forward_packed.1} parent=35 // pred_fallthru
          _
        // Predicated region
        $region41: #{resblock_forward_packed.1} parent=35 // pred_check
          %p227 = pneg %p65
        $region42: #{resblock_forward_packed.1} parent=35 // pred_check_branch
          %229 = sbr.rel (%p227) target = $region44
        $region43: #{resblock_forward_packed.1} parent=35 // pred_region
          %230 = dma.done [#allocation6], 6144
        $region44: #{resblock_forward_packed.1} parent=35 // pred_fallthru
          _
        // Predicated region
        $region45: #{resblock_forward_packed.1} parent=35 // pred_check
          %p231 = pneg %p86
        $region46: #{resblock_forward_packed.1} parent=35 // pred_check_branch
          %233 = sbr.rel (%p231) target = $region48
        $region47: #{resblock_forward_packed.1} parent=35 // pred_region
          %234 = dma.done [#allocation6], 6144
        $region48: #{resblock_forward_packed.1} parent=35 // pred_fallthru
          _
        // Predicated region
        $region49: #{resblock_forward_packed.1} parent=35 // pred_check
          %p235 = pneg %p107
        $region50: #{resblock_forward_packed.1} parent=35 // pred_check_branch
          %237 = sbr.rel (%p235) target = $region52
        $region51: #{resblock_forward_packed.1} parent=35 // pred_region
          %238 = dma.done [#allocation9], 128
        $region52: #{resblock_forward_packed.1} parent=35 // pred_fallthru
          _
        %s239 = sand.u32 %s31, 1
        %s240 = scalar_lea.sflag [#allocation3], %s239
        %s241 = sand.u32 %s31, 1
        %s242 = smul.addr %s241, 32
        %s243 = scalar_lea.vmem [#allocation2], %s242
        %p244 = pneg %p44
        %p245 = pneg %p41
        %p246 = pneg %p65
        %p247 = pneg %p62
        %p248 = pneg %p86
        %p249 = pneg %p83
        %p250 = pneg %p107
        %p251 = pneg %p104
        %p252 = pneg %p133
        %p253 = pneg %p130
        %s254 = sand.u32 %s120, 1
        %s255 = scalar_lea.sflag [#allocation4], %s254
        %s256 = sand.u32 %s120, 1
        %s257 = smul.addr %s256, 32
        %s258 = scalar_lea.vmem [#allocation10], %s257
        %s259 = smul.u32 2, %s23
        %s260 = smul.u32 2, %s23
        %v261 = vld [vmem:[%s222] sm:$0xff]
        %v262 = vld [vmem:[%s222 + $0x8] sm:$0xff]
        %v263 = vld [vmem:[%s222 + $0x10] sm:$0xff]
        %v264 = vld [vmem:[%s222 + $0x18] sm:$0xff]
        %v265 = vld [vmem:[#allocation8] sm:$0x3f]
        %v266 = vlaneseq
        %v267 = vshrl.u32 %v266, 7
        %v268 = vadd.s32 %v267, 8
        %vm269 = vcmp.ne.s32.totalorder %v267, 0
        %vm270 = vcmp.ne.s32.totalorder %v268, 0
        %vm271 = vcmp.ne.s32.totalorder %v267, 15
        %vm272 = vcmp.ne.s32.totalorder %v268, 15
        %v273 = vrot.slane %v261, 7
        %v274 = vrot.slane %v263, 7
        %v275 = vrot.slane %v262, 7
        %v276 = vrot.slane %v264, 7
        %vm277 = vcmp.lt.s32.totalorder %v267, 1
        %v278 = vsel %vm277, %v273, %v275
        %v279 = vsel %vm277, %v274, %v276
        %v280 = vsel %vm277, %v275, %v273
        %v281 = vsel %vm277, %v276, %v274
        %v282 = vsel %vm269, %v280, 0.0
        %v283 = vsel %vm270, %v278, 0.0
        %v284 = vsel %vm269, %v281, 0.0
        %v285 = vsel %vm270, %v279, 0.0
        %v286 = vrot.slane %v261, 1
        %v287 = vrot.slane %v263, 1
        %v288 = vrot.slane %v262, 1
        %v289 = vrot.slane %v264, 1
        %vm290 = vcmp.lt.s32.totalorder %v267, 7
        %v291 = vsel %vm290, %v286, %v288
        %v292 = vsel %vm290, %v287, %v289
        %v293 = vsel %vm290, %v288, %v286
        %v294 = vsel %vm290, %v289, %v287
        %v295 = vsel %vm271, %v291, 0.0
        %v296 = vsel %vm272, %v293, 0.0
        %v297 = vsel %vm271, %v292, 0.0
        %v298 = vsel %vm272, %v294, 0.0
        %v299 = vld [vmem:[#allocation5] sm:$0xff]
        %v300 = vld [vmem:[#allocation5 + $0x8] sm:$0xff]
        %v301 = vld [vmem:[#allocation5 + $0x10] sm:$0xff]
        %v302 = vld [vmem:[#allocation5 + $0x18] sm:$0xff]
        %v303 = vld [vmem:[#allocation5 + $0x20] sm:$0xff]
        %v304 = vld [vmem:[#allocation5 + $0x28] sm:$0xff]
        %v305 = vld [vmem:[#allocation5 + $0x30] sm:$0xff]
        %v306 = vld [vmem:[#allocation5 + $0x38] sm:$0xff]
        %v307 = vld [vmem:[#allocation5 + $0x40] sm:$0xff]
        %v308 = vld [vmem:[#allocation5 + $0x48] sm:$0xff]
        %v309 = vld [vmem:[#allocation5 + $0x50] sm:$0xff]
        %v310 = vld [vmem:[#allocation5 + $0x58] sm:$0xff]
        %v311 = vld [vmem:[#allocation5 + $0x60] sm:$0xff]
        %v312 = vld [vmem:[#allocation5 + $0x68] sm:$0xff]
        %v313 = vld [vmem:[#allocation5 + $0x70] sm:$0xff]
        %v314 = vld [vmem:[#allocation5 + $0x78] sm:$0xff]
        %s315 = scalar_lea.vmem [#allocation5], 128
        %v316 = vld [vmem:[%s315] sm:$0xff]
        %v317 = vld [vmem:[%s315 + $0x8] sm:$0xff]
        %v318 = vld [vmem:[%s315 + $0x10] sm:$0xff]
        %v319 = vld [vmem:[%s315 + $0x18] sm:$0xff]
        %v320 = vld [vmem:[%s315 + $0x20] sm:$0xff]
        %v321 = vld [vmem:[%s315 + $0x28] sm:$0xff]
        %v322 = vld [vmem:[%s315 + $0x30] sm:$0xff]
        %v323 = vld [vmem:[%s315 + $0x38] sm:$0xff]
        %v324 = vld [vmem:[%s315 + $0x40] sm:$0xff]
        %v325 = vld [vmem:[%s315 + $0x48] sm:$0xff]
        %v326 = vld [vmem:[%s315 + $0x50] sm:$0xff]
        %v327 = vld [vmem:[%s315 + $0x58] sm:$0xff]
        %v328 = vld [vmem:[%s315 + $0x60] sm:$0xff]
        %v329 = vld [vmem:[%s315 + $0x68] sm:$0xff]
        %v330 = vld [vmem:[%s315 + $0x70] sm:$0xff]
        %v331 = vld [vmem:[%s315 + $0x78] sm:$0xff]
        %332 = vmatprep.subr.mxu0 0.0
        %333 = vmatpush1.msra.mxu0 %v331
        %334 = vmatprep.subr.mxu0 0.0
        %335 = vmatpush1.msra.mxu0 %v330
        %336 = vmatprep.subr.mxu0 0.0
        %337 = vmatpush1.msra.mxu0 %v329
        %338 = vmatprep.subr.mxu0 0.0
        %339 = vmatpush1.msra.mxu0 %v328
        %340 = vmatprep.subr.mxu0 0.0
        %341 = vmatpush1.msra.mxu0 %v327
        %342 = vmatprep.subr.mxu0 0.0
        %343 = vmatpush1.msra.mxu0 %v326
        %344 = vmatprep.subr.mxu0 0.0
        %345 = vmatpush1.msra.mxu0 %v325
        %346 = vmatprep.subr.mxu0 0.0
        %347 = vmatpush1.msra.mxu0 %v324
        %348 = vmatprep.subr.mxu0 0.0
        %349 = vmatpush1.msra.mxu0 %v323
        %350 = vmatprep.subr.mxu0 0.0
        %351 = vmatpush1.msra.mxu0 %v322
        %352 = vmatprep.subr.mxu0 0.0
        %353 = vmatpush1.msra.mxu0 %v321
        %354 = vmatprep.subr.mxu0 0.0
        %355 = vmatpush1.msra.mxu0 %v320
        %356 = vmatprep.subr.mxu0 0.0
        %357 = vmatpush1.msra.mxu0 %v319
        %358 = vmatprep.subr.mxu0 0.0
        %359 = vmatpush1.msra.mxu0 %v318
        %360 = vmatprep.subr.mxu0 0.0
        %361 = vmatpush1.msra.mxu0 %v317
        %362 = vmatprep.subr.mxu0 0.0
        %363 = vmatpush1.msra.mxu0 %v316
        %364 = vmatprep.subr.mxu0 0.0
        %365 = vmatpush2.msra.mxu0 0.0
        %366 = vmatprep.subr.mxu0 0.0
        %367 = vmatpush2.msra.mxu0 0.0
        %368 = vmatprep.subr.mxu0 0.0
        %369 = vmatpush2.msra.mxu0 0.0
        %370 = vmatprep.subr.mxu0 0.0
        %371 = vmatpush2.msra.mxu0 0.0
        %372 = vmatprep.subr.mxu0 0.0
        %373 = vmatpush2.msra.mxu0 0.0
        %374 = vmatprep.subr.mxu0 0.0
        %375 = vmatpush2.msra.mxu0 0.0
        %376 = vmatprep.subr.mxu0 0.0
        %377 = vmatpush2.msra.mxu0 0.0
        %378 = vmatprep.subr.mxu0 0.0
        %379 = vmatpush2.msra.mxu0 0.0
        %380 = vmatprep.subr.mxu0 0.0
        %381 = vmatpush2.msra.mxu0 0.0
        %382 = vmatprep.subr.mxu0 0.0
        %383 = vmatpush2.msra.mxu0 0.0
        %384 = vmatprep.subr.mxu0 0.0
        %385 = vmatpush2.msra.mxu0 0.0
        %386 = vmatprep.subr.mxu0 0.0
        %387 = vmatpush2.msra.mxu0 0.0
        %388 = vmatprep.subr.mxu0 0.0
        %389 = vmatpush2.msra.mxu0 0.0
        %390 = vmatprep.subr.mxu0 0.0
        %391 = vmatpush2.msra.mxu0 0.0
        %392 = vmatprep.subr.mxu0 0.0
        %393 = vmatpush2.msra.mxu0 0.0
        %394 = vmatprep.subr.mxu0 0.0
        %395 = vmatpush2.msra.mxu0 0.0
        %396 = vmatprep.mubr.f32.mxu0 0.0
        %397 = vmatmul.mubr.f32.gmra.mxu0 %v261
        %v398 = vpop.f32.mrf.mxu0
        %v399 = vadd.f32 0.0, %v398
        %v400 = vpop.f32.mrf.mxu0
        %401 = vmatprep.mubr.f32.mxu0 0.0
        %402 = vmatmul.mubr.f32.gmra.mxu0 %v262
        %v403 = vpop.f32.mrf.mxu0
        %v404 = vadd.f32 0.0, %v403
        %v405 = vpop.f32.mrf.mxu0
        %406 = vmatprep.mubr.f32.mxu0 0.0
        %407 = vmatmul.mubr.f32.gmra.mxu0 %v263
        %v408 = vpop.f32.mrf.mxu0
        %v409 = vadd.f32 0.0, %v408
        %v410 = vpop.f32.mrf.mxu0
        %411 = vmatprep.mubr.f32.mxu0 0.0
        %412 = vmatmul.mubr.f32.gmra.mxu0 %v264
        %v413 = vpop.f32.mrf.mxu0
        %v414 = vadd.f32 0.0, %v413
        %v415 = vpop.f32.mrf.mxu0
        %416 = vdwg.mxu0
        %417 = vmatprep.subr.mxu0 0.0
        %418 = vmatpush1.msra.mxu0 %v314
        %419 = vmatprep.subr.mxu0 0.0
        %420 = vmatpush1.msra.mxu0 %v313
        %421 = vmatprep.subr.mxu0 0.0
        %422 = vmatpush1.msra.mxu0 %v312
        %423 = vmatprep.subr.mxu0 0.0
        %424 = vmatpush1.msra.mxu0 %v311
        %425 = vmatprep.subr.mxu0 0.0
        %426 = vmatpush1.msra.mxu0 %v310
        %427 = vmatprep.subr.mxu0 0.0
        %428 = vmatpush1.msra.mxu0 %v309
        %429 = vmatprep.subr.mxu0 0.0
        %430 = vmatpush1.msra.mxu0 %v308
        %431 = vmatprep.subr.mxu0 0.0
        %432 = vmatpush1.msra.mxu0 %v307
        %433 = vmatprep.subr.mxu0 0.0
        %434 = vmatpush1.msra.mxu0 %v306
        %435 = vmatprep.subr.mxu0 0.0
        %436 = vmatpush1.msra.mxu0 %v305
        %437 = vmatprep.subr.mxu0 0.0
        %438 = vmatpush1.msra.mxu0 %v304
        %439 = vmatprep.subr.mxu0 0.0
        %440 = vmatpush1.msra.mxu0 %v303
        %441 = vmatprep.subr.mxu0 0.0
        %442 = vmatpush1.msra.mxu0 %v302
        %443 = vmatprep.subr.mxu0 0.0
        %444 = vmatpush1.msra.mxu0 %v301
        %445 = vmatprep.subr.mxu0 0.0
        %446 = vmatpush1.msra.mxu0 %v300
        %447 = vmatprep.subr.mxu0 0.0
        %448 = vmatpush1.msra.mxu0 %v299
        %449 = vmatprep.subr.mxu0 0.0
        %450 = vmatpush2.msra.mxu0 0.0
        %451 = vmatprep.subr.mxu0 0.0
        %452 = vmatpush2.msra.mxu0 0.0
        %453 = vmatprep.subr.mxu0 0.0
        %454 = vmatpush2.msra.mxu0 0.0
        %455 = vmatprep.subr.mxu0 0.0
        %456 = vmatpush2.msra.mxu0 0.0
        %457 = vmatprep.subr.mxu0 0.0
        %458 = vmatpush2.msra.mxu0 0.0
        %459 = vmatprep.subr.mxu0 0.0
        %460 = vmatpush2.msra.mxu0 0.0
        %461 = vmatprep.subr.mxu0 0.0
        %462 = vmatpush2.msra.mxu0 0.0
        %463 = vmatprep.subr.mxu0 0.0
        %464 = vmatpush2.msra.mxu0 0.0
        %465 = vmatprep.subr.mxu0 0.0
        %466 = vmatpush2.msra.mxu0 0.0
        %467 = vmatprep.subr.mxu0 0.0
        %468 = vmatpush2.msra.mxu0 0.0
        %469 = vmatprep.subr.mxu0 0.0
        %470 = vmatpush2.msra.mxu0 0.0
        %471 = vmatprep.subr.mxu0 0.0
        %472 = vmatpush2.msra.mxu0 0.0
        %473 = vmatprep.subr.mxu0 0.0
        %474 = vmatpush2.msra.mxu0 0.0
        %475 = vmatprep.subr.mxu0 0.0
        %476 = vmatpush2.msra.mxu0 0.0
        %477 = vmatprep.subr.mxu0 0.0
        %478 = vmatpush2.msra.mxu0 0.0
        %479 = vmatprep.subr.mxu0 0.0
        %480 = vmatpush2.msra.mxu0 0.0
        %481 = vmatprep.mubr.f32.mxu0 0.0
        %482 = vmatmul.mubr.f32.gmra.mxu0 %v282
        %v483 = vpop.f32.mrf.mxu0
        %v484 = vadd.f32 %v399, %v483
        %v485 = vpop.f32.mrf.mxu0
        %486 = vmatprep.mubr.f32.mxu0 0.0
        %487 = vmatmul.mubr.f32.gmra.mxu0 %v283
        %v488 = vpop.f32.mrf.mxu0
        %v489 = vadd.f32 %v404, %v488
        %v490 = vpop.f32.mrf.mxu0
        %491 = vmatprep.mubr.f32.mxu0 0.0
        %492 = vmatmul.mubr.f32.gmra.mxu0 %v284
        %v493 = vpop.f32.mrf.mxu0
        %v494 = vadd.f32 %v409, %v493
        %v495 = vpop.f32.mrf.mxu0
        %496 = vmatprep.mubr.f32.mxu0 0.0
        %497 = vmatmul.mubr.f32.gmra.mxu0 %v285
        %v498 = vpop.f32.mrf.mxu0
        %v499 = vadd.f32 %v414, %v498
        %v500 = vpop.f32.mrf.mxu0
        %501 = vdwg.mxu0
        %s502 = scalar_lea.vmem [#allocation5], 256
        %v503 = vld [vmem:[%s502] sm:$0xff]
        %v504 = vld [vmem:[%s502 + $0x8] sm:$0xff]
        %v505 = vld [vmem:[%s502 + $0x10] sm:$0xff]
        %v506 = vld [vmem:[%s502 + $0x18] sm:$0xff]
        %v507 = vld [vmem:[%s502 + $0x20] sm:$0xff]
        %v508 = vld [vmem:[%s502 + $0x28] sm:$0xff]
        %v509 = vld [vmem:[%s502 + $0x30] sm:$0xff]
        %v510 = vld [vmem:[%s502 + $0x38] sm:$0xff]
        %v511 = vld [vmem:[%s502 + $0x40] sm:$0xff]
        %v512 = vld [vmem:[%s502 + $0x48] sm:$0xff]
        %v513 = vld [vmem:[%s502 + $0x50] sm:$0xff]
        %v514 = vld [vmem:[%s502 + $0x58] sm:$0xff]
        %v515 = vld [vmem:[%s502 + $0x60] sm:$0xff]
        %v516 = vld [vmem:[%s502 + $0x68] sm:$0xff]
        %v517 = vld [vmem:[%s502 + $0x70] sm:$0xff]
        %v518 = vld [vmem:[%s502 + $0x78] sm:$0xff]
        %519 = vmatprep.subr.mxu0 0.0
        %520 = vmatpush1.msra.mxu0 %v518
        %521 = vmatprep.subr.mxu0 0.0
        %522 = vmatpush1.msra.mxu0 %v517
        %523 = vmatprep.subr.mxu0 0.0
        %524 = vmatpush1.msra.mxu0 %v516
        %525 = vmatprep.subr.mxu0 0.0
        %526 = vmatpush1.msra.mxu0 %v515
        %527 = vmatprep.subr.mxu0 0.0
        %528 = vmatpush1.msra.mxu0 %v514
        %529 = vmatprep.subr.mxu0 0.0
        %530 = vmatpush1.msra.mxu0 %v513
        %531 = vmatprep.subr.mxu0 0.0
        %532 = vmatpush1.msra.mxu0 %v512
        %533 = vmatprep.subr.mxu0 0.0
        %534 = vmatpush1.msra.mxu0 %v511
        %535 = vmatprep.subr.mxu0 0.0
        %536 = vmatpush1.msra.mxu0 %v510
        %537 = vmatprep.subr.mxu0 0.0
        %538 = vmatpush1.msra.mxu0 %v509
        %539 = vmatprep.subr.mxu0 0.0
        %540 = vmatpush1.msra.mxu0 %v508
        %541 = vmatprep.subr.mxu0 0.0
        %542 = vmatpush1.msra.mxu0 %v507
        %543 = vmatprep.subr.mxu0 0.0
        %544 = vmatpush1.msra.mxu0 %v506
        %545 = vmatprep.subr.mxu0 0.0
        %546 = vmatpush1.msra.mxu0 %v505
        %547 = vmatprep.subr.mxu0 0.0
        %548 = vmatpush1.msra.mxu0 %v504
        %549 = vmatprep.subr.mxu0 0.0
        %550 = vmatpush1.msra.mxu0 %v503
        %551 = vmatprep.subr.mxu0 0.0
        %552 = vmatpush2.msra.mxu0 0.0
        %553 = vmatprep.subr.mxu0 0.0
        %554 = vmatpush2.msra.mxu0 0.0
        %555 = vmatprep.subr.mxu0 0.0
        %556 = vmatpush2.msra.mxu0 0.0
        %557 = vmatprep.subr.mxu0 0.0
        %558 = vmatpush2.msra.mxu0 0.0
        %559 = vmatprep.subr.mxu0 0.0
        %560 = vmatpush2.msra.mxu0 0.0
        %561 = vmatprep.subr.mxu0 0.0
        %562 = vmatpush2.msra.mxu0 0.0
        %563 = vmatprep.subr.mxu0 0.0
        %564 = vmatpush2.msra.mxu0 0.0
        %565 = vmatprep.subr.mxu0 0.0
        %566 = vmatpush2.msra.mxu0 0.0
        %567 = vmatprep.subr.mxu0 0.0
        %568 = vmatpush2.msra.mxu0 0.0
        %569 = vmatprep.subr.mxu0 0.0
        %570 = vmatpush2.msra.mxu0 0.0
        %571 = vmatprep.subr.mxu0 0.0
        %572 = vmatpush2.msra.mxu0 0.0
        %573 = vmatprep.subr.mxu0 0.0
        %574 = vmatpush2.msra.mxu0 0.0
        %575 = vmatprep.subr.mxu0 0.0
        %576 = vmatpush2.msra.mxu0 0.0
        %577 = vmatprep.subr.mxu0 0.0
        %578 = vmatpush2.msra.mxu0 0.0
        %579 = vmatprep.subr.mxu0 0.0
        %580 = vmatpush2.msra.mxu0 0.0
        %581 = vmatprep.subr.mxu0 0.0
        %582 = vmatpush2.msra.mxu0 0.0
        %583 = vmatprep.mubr.f32.mxu0 0.0
        %584 = vmatmul.mubr.f32.gmra.mxu0 %v295
        %v585 = vpop.f32.mrf.mxu0
        %v586 = vadd.f32 0.0, %v585
        %v587 = vpop.f32.mrf.mxu0
        %588 = vmatprep.mubr.f32.mxu0 0.0
        %589 = vmatmul.mubr.f32.gmra.mxu0 %v296
        %v590 = vpop.f32.mrf.mxu0
        %v591 = vadd.f32 0.0, %v590
        %v592 = vpop.f32.mrf.mxu0
        %593 = vmatprep.mubr.f32.mxu0 0.0
        %594 = vmatmul.mubr.f32.gmra.mxu0 %v297
        %v595 = vpop.f32.mrf.mxu0
        %v596 = vadd.f32 0.0, %v595
        %v597 = vpop.f32.mrf.mxu0
        %598 = vmatprep.mubr.f32.mxu0 0.0
        %599 = vmatmul.mubr.f32.gmra.mxu0 %v298
        %v600 = vpop.f32.mrf.mxu0
        %v601 = vadd.f32 0.0, %v600
        %v602 = vpop.f32.mrf.mxu0
        %603 = vdwg.mxu0
        %v604 = vadd.f32 %v484, %v586
        %v605 = vadd.f32 %v489, %v591
        %v606 = vadd.f32 %v494, %v596
        %v607 = vadd.f32 %v499, %v601
        %v608 = vlaneseq
        %v609 = vshrl.u32 %v608, 7
        %v610 = vsub.s32 0, %v609
        %v611 = vrot.slane %v265, %v610
        %v612 = vadd.f32 %v604, %v611
        %v613 = vadd.f32 %v605, %v611
        %v614 = vadd.f32 %v606, %v611
        %v615 = vadd.f32 %v607, %v611
        %v616 = vmax.f32 %v612, 0.0
        %v617 = vmax.f32 %v613, 0.0
        %v618 = vmax.f32 %v614, 0.0
        %v619 = vmax.f32 %v615, 0.0
        %v620 = vlaneseq
        %v621 = vshrl.u32 %v620, 7
        %v622 = vsub.s32 1, %v621
        %v623 = vrot.slane %v265, %v622
        %v624 = vmul.f32 %v616, %v623
        %v625 = vmul.f32 %v617, %v623
        %v626 = vmul.f32 %v618, %v623
        %v627 = vmul.f32 %v619, %v623
        %v628 = vlaneseq
        %v629 = vshrl.u32 %v628, 7
        %v630 = vsub.s32 2, %v629
        %v631 = vrot.slane %v265, %v630
        %v632 = vadd.f32 %v624, %v631
        %v633 = vadd.f32 %v625, %v631
        %v634 = vadd.f32 %v626, %v631
        %v635 = vadd.f32 %v627, %v631
        %v636 = vrot.slane %v632, 7
        %v637 = vrot.slane %v634, 7
        %v638 = vrot.slane %v633, 7
        %v639 = vrot.slane %v635, 7
        %v640 = vsel %vm277, %v636, %v638
        %v641 = vsel %vm277, %v637, %v639
        %v642 = vsel %vm277, %v638, %v636
        %v643 = vsel %vm277, %v639, %v637
        %v644 = vsel %vm269, %v642, 0.0
        %v645 = vsel %vm270, %v640, 0.0
        %v646 = vsel %vm269, %v643, 0.0
        %v647 = vsel %vm270, %v641, 0.0
        %v648 = vrot.slane %v632, 1
        %v649 = vrot.slane %v634, 1
        %v650 = vrot.slane %v633, 1
        %v651 = vrot.slane %v635, 1
        %v652 = vsel %vm290, %v648, %v650
        %v653 = vsel %vm290, %v649, %v651
        %v654 = vsel %vm290, %v650, %v648
        %v655 = vsel %vm290, %v651, %v649
        %v656 = vsel %vm271, %v652, 0.0
        %v657 = vsel %vm272, %v654, 0.0
        %v658 = vsel %vm271, %v653, 0.0
        %v659 = vsel %vm272, %v655, 0.0
        %v660 = vld [vmem:[#allocation7] sm:$0xff]
        %v661 = vld [vmem:[#allocation7 + $0x8] sm:$0xff]
        %v662 = vld [vmem:[#allocation7 + $0x10] sm:$0xff]
        %v663 = vld [vmem:[#allocation7 + $0x18] sm:$0xff]
        %v664 = vld [vmem:[#allocation7 + $0x20] sm:$0xff]
        %v665 = vld [vmem:[#allocation7 + $0x28] sm:$0xff]
        %v666 = vld [vmem:[#allocation7 + $0x30] sm:$0xff]
        %v667 = vld [vmem:[#allocation7 + $0x38] sm:$0xff]
        %v668 = vld [vmem:[#allocation7 + $0x40] sm:$0xff]
        %v669 = vld [vmem:[#allocation7 + $0x48] sm:$0xff]
        %v670 = vld [vmem:[#allocation7 + $0x50] sm:$0xff]
        %v671 = vld [vmem:[#allocation7 + $0x58] sm:$0xff]
        %v672 = vld [vmem:[#allocation7 + $0x60] sm:$0xff]
        %v673 = vld [vmem:[#allocation7 + $0x68] sm:$0xff]
        %v674 = vld [vmem:[#allocation7 + $0x70] sm:$0xff]
        %v675 = vld [vmem:[#allocation7 + $0x78] sm:$0xff]
        %s676 = scalar_lea.vmem [#allocation7], 128
        %v677 = vld [vmem:[%s676] sm:$0xff]
        %v678 = vld [vmem:[%s676 + $0x8] sm:$0xff]
        %v679 = vld [vmem:[%s676 + $0x10] sm:$0xff]
        %v680 = vld [vmem:[%s676 + $0x18] sm:$0xff]
        %v681 = vld [vmem:[%s676 + $0x20] sm:$0xff]
        %v682 = vld [vmem:[%s676 + $0x28] sm:$0xff]
        %v683 = vld [vmem:[%s676 + $0x30] sm:$0xff]
        %v684 = vld [vmem:[%s676 + $0x38] sm:$0xff]
        %v685 = vld [vmem:[%s676 + $0x40] sm:$0xff]
        %v686 = vld [vmem:[%s676 + $0x48] sm:$0xff]
        %v687 = vld [vmem:[%s676 + $0x50] sm:$0xff]
        %v688 = vld [vmem:[%s676 + $0x58] sm:$0xff]
        %v689 = vld [vmem:[%s676 + $0x60] sm:$0xff]
        %v690 = vld [vmem:[%s676 + $0x68] sm:$0xff]
        %v691 = vld [vmem:[%s676 + $0x70] sm:$0xff]
        %v692 = vld [vmem:[%s676 + $0x78] sm:$0xff]
        %693 = vmatprep.subr.mxu0 0.0
        %694 = vmatpush1.msra.mxu0 %v692
        %695 = vmatprep.subr.mxu0 0.0
        %696 = vmatpush1.msra.mxu0 %v691
        %697 = vmatprep.subr.mxu0 0.0
        %698 = vmatpush1.msra.mxu0 %v690
        %699 = vmatprep.subr.mxu0 0.0
        %700 = vmatpush1.msra.mxu0 %v689
        %701 = vmatprep.subr.mxu0 0.0
        %702 = vmatpush1.msra.mxu0 %v688
        %703 = vmatprep.subr.mxu0 0.0
        %704 = vmatpush1.msra.mxu0 %v687
        %705 = vmatprep.subr.mxu0 0.0
        %706 = vmatpush1.msra.mxu0 %v686
        %707 = vmatprep.subr.mxu0 0.0
        %708 = vmatpush1.msra.mxu0 %v685
        %709 = vmatprep.subr.mxu0 0.0
        %710 = vmatpush1.msra.mxu0 %v684
        %711 = vmatprep.subr.mxu0 0.0
        %712 = vmatpush1.msra.mxu0 %v683
        %713 = vmatprep.subr.mxu0 0.0
        %714 = vmatpush1.msra.mxu0 %v682
        %715 = vmatprep.subr.mxu0 0.0
        %716 = vmatpush1.msra.mxu0 %v681
        %717 = vmatprep.subr.mxu0 0.0
        %718 = vmatpush1.msra.mxu0 %v680
        %719 = vmatprep.subr.mxu0 0.0
        %720 = vmatpush1.msra.mxu0 %v679
        %721 = vmatprep.subr.mxu0 0.0
        %722 = vmatpush1.msra.mxu0 %v678
        %723 = vmatprep.subr.mxu0 0.0
        %724 = vmatpush1.msra.mxu0 %v677
        %725 = vmatprep.subr.mxu0 0.0
        %726 = vmatpush2.msra.mxu0 0.0
        %727 = vmatprep.subr.mxu0 0.0
        %728 = vmatpush2.msra.mxu0 0.0
        %729 = vmatprep.subr.mxu0 0.0
        %730 = vmatpush2.msra.mxu0 0.0
        %731 = vmatprep.subr.mxu0 0.0
        %732 = vmatpush2.msra.mxu0 0.0
        %733 = vmatprep.subr.mxu0 0.0
        %734 = vmatpush2.msra.mxu0 0.0
        %735 = vmatprep.subr.mxu0 0.0
        %736 = vmatpush2.msra.mxu0 0.0
        %737 = vmatprep.subr.mxu0 0.0
        %738 = vmatpush2.msra.mxu0 0.0
        %739 = vmatprep.subr.mxu0 0.0
        %740 = vmatpush2.msra.mxu0 0.0
        %741 = vmatprep.subr.mxu0 0.0
        %742 = vmatpush2.msra.mxu0 0.0
        %743 = vmatprep.subr.mxu0 0.0
        %744 = vmatpush2.msra.mxu0 0.0
        %745 = vmatprep.subr.mxu0 0.0
        %746 = vmatpush2.msra.mxu0 0.0
        %747 = vmatprep.subr.mxu0 0.0
        %748 = vmatpush2.msra.mxu0 0.0
        %749 = vmatprep.subr.mxu0 0.0
        %750 = vmatpush2.msra.mxu0 0.0
        %751 = vmatprep.subr.mxu0 0.0
        %752 = vmatpush2.msra.mxu0 0.0
        %753 = vmatprep.subr.mxu0 0.0
        %754 = vmatpush2.msra.mxu0 0.0
        %755 = vmatprep.subr.mxu0 0.0
        %756 = vmatpush2.msra.mxu0 0.0
        %757 = vmatprep.mubr.f32.mxu0 0.0
        %758 = vmatmul.mubr.f32.gmra.mxu0 %v632
        %v759 = vpop.f32.mrf.mxu0
        %v760 = vadd.f32 0.0, %v759
        %v761 = vpop.f32.mrf.mxu0
        %762 = vmatprep.mubr.f32.mxu0 0.0
        %763 = vmatmul.mubr.f32.gmra.mxu0 %v633
        %v764 = vpop.f32.mrf.mxu0
        %v765 = vadd.f32 0.0, %v764
        %v766 = vpop.f32.mrf.mxu0
        %767 = vmatprep.mubr.f32.mxu0 0.0
        %768 = vmatmul.mubr.f32.gmra.mxu0 %v634
        %v769 = vpop.f32.mrf.mxu0
        %v770 = vadd.f32 0.0, %v769
        %v771 = vpop.f32.mrf.mxu0
        %772 = vmatprep.mubr.f32.mxu0 0.0
        %773 = vmatmul.mubr.f32.gmra.mxu0 %v635
        %v774 = vpop.f32.mrf.mxu0
        %v775 = vadd.f32 0.0, %v774
        %v776 = vpop.f32.mrf.mxu0
        %777 = vdwg.mxu0
        %778 = vmatprep.subr.mxu0 0.0
        %779 = vmatpush1.msra.mxu0 %v675
        %780 = vmatprep.subr.mxu0 0.0
        %781 = vmatpush1.msra.mxu0 %v674
        %782 = vmatprep.subr.mxu0 0.0
        %783 = vmatpush1.msra.mxu0 %v673
        %784 = vmatprep.subr.mxu0 0.0
        %785 = vmatpush1.msra.mxu0 %v672
        %786 = vmatprep.subr.mxu0 0.0
        %787 = vmatpush1.msra.mxu0 %v671
        %788 = vmatprep.subr.mxu0 0.0
        %789 = vmatpush1.msra.mxu0 %v670
        %790 = vmatprep.subr.mxu0 0.0
        %791 = vmatpush1.msra.mxu0 %v669
        %792 = vmatprep.subr.mxu0 0.0
        %793 = vmatpush1.msra.mxu0 %v668
        %794 = vmatprep.subr.mxu0 0.0
        %795 = vmatpush1.msra.mxu0 %v667
        %796 = vmatprep.subr.mxu0 0.0
        %797 = vmatpush1.msra.mxu0 %v666
        %798 = vmatprep.subr.mxu0 0.0
        %799 = vmatpush1.msra.mxu0 %v665
        %800 = vmatprep.subr.mxu0 0.0
        %801 = vmatpush1.msra.mxu0 %v664
        %802 = vmatprep.subr.mxu0 0.0
        %803 = vmatpush1.msra.mxu0 %v663
        %804 = vmatprep.subr.mxu0 0.0
        %805 = vmatpush1.msra.mxu0 %v662
        %806 = vmatprep.subr.mxu0 0.0
        %807 = vmatpush1.msra.mxu0 %v661
        %808 = vmatprep.subr.mxu0 0.0
        %809 = vmatpush1.msra.mxu0 %v660
        %810 = vmatprep.subr.mxu0 0.0
        %811 = vmatpush2.msra.mxu0 0.0
        %812 = vmatprep.subr.mxu0 0.0
        %813 = vmatpush2.msra.mxu0 0.0
        %814 = vmatprep.subr.mxu0 0.0
        %815 = vmatpush2.msra.mxu0 0.0
        %816 = vmatprep.subr.mxu0 0.0
        %817 = vmatpush2.msra.mxu0 0.0
        %818 = vmatprep.subr.mxu0 0.0
        %819 = vmatpush2.msra.mxu0 0.0
        %820 = vmatprep.subr.mxu0 0.0
        %821 = vmatpush2.msra.mxu0 0.0
        %822 = vmatprep.subr.mxu0 0.0
        %823 = vmatpush2.msra.mxu0 0.0
        %824 = vmatprep.subr.mxu0 0.0
        %825 = vmatpush2.msra.mxu0 0.0
        %826 = vmatprep.subr.mxu0 0.0
        %827 = vmatpush2.msra.mxu0 0.0
        %828 = vmatprep.subr.mxu0 0.0
        %829 = vmatpush2.msra.mxu0 0.0
        %830 = vmatprep.subr.mxu0 0.0
        %831 = vmatpush2.msra.mxu0 0.0
        %832 = vmatprep.subr.mxu0 0.0
        %833 = vmatpush2.msra.mxu0 0.0
        %834 = vmatprep.subr.mxu0 0.0
        %835 = vmatpush2.msra.mxu0 0.0
        %836 = vmatprep.subr.mxu0 0.0
        %837 = vmatpush2.msra.mxu0 0.0
        %838 = vmatprep.subr.mxu0 0.0
        %839 = vmatpush2.msra.mxu0 0.0
        %840 = vmatprep.subr.mxu0 0.0
        %841 = vmatpush2.msra.mxu0 0.0
        %842 = vmatprep.mubr.f32.mxu0 0.0
        %843 = vmatmul.mubr.f32.gmra.mxu0 %v644
        %v844 = vpop.f32.mrf.mxu0
        %v845 = vadd.f32 %v760, %v844
        %v846 = vpop.f32.mrf.mxu0
        %847 = vmatprep.mubr.f32.mxu0 0.0
        %848 = vmatmul.mubr.f32.gmra.mxu0 %v645
        %v849 = vpop.f32.mrf.mxu0
        %v850 = vadd.f32 %v765, %v849
        %v851 = vpop.f32.mrf.mxu0
        %852 = vmatprep.mubr.f32.mxu0 0.0
        %853 = vmatmul.mubr.f32.gmra.mxu0 %v646
        %v854 = vpop.f32.mrf.mxu0
        %v855 = vadd.f32 %v770, %v854
        %v856 = vpop.f32.mrf.mxu0
        %857 = vmatprep.mubr.f32.mxu0 0.0
        %858 = vmatmul.mubr.f32.gmra.mxu0 %v647
        %v859 = vpop.f32.mrf.mxu0
        %v860 = vadd.f32 %v775, %v859
        %v861 = vpop.f32.mrf.mxu0
        %862 = vdwg.mxu0
        %s863 = scalar_lea.vmem [#allocation7], 256
        %v864 = vld [vmem:[%s863] sm:$0xff]
        %v865 = vld [vmem:[%s863 + $0x8] sm:$0xff]
        %v866 = vld [vmem:[%s863 + $0x10] sm:$0xff]
        %v867 = vld [vmem:[%s863 + $0x18] sm:$0xff]
        %v868 = vld [vmem:[%s863 + $0x20] sm:$0xff]
        %v869 = vld [vmem:[%s863 + $0x28] sm:$0xff]
        %v870 = vld [vmem:[%s863 + $0x30] sm:$0xff]
        %v871 = vld [vmem:[%s863 + $0x38] sm:$0xff]
        %v872 = vld [vmem:[%s863 + $0x40] sm:$0xff]
        %v873 = vld [vmem:[%s863 + $0x48] sm:$0xff]
        %v874 = vld [vmem:[%s863 + $0x50] sm:$0xff]
        %v875 = vld [vmem:[%s863 + $0x58] sm:$0xff]
        %v876 = vld [vmem:[%s863 + $0x60] sm:$0xff]
        %v877 = vld [vmem:[%s863 + $0x68] sm:$0xff]
        %v878 = vld [vmem:[%s863 + $0x70] sm:$0xff]
        %v879 = vld [vmem:[%s863 + $0x78] sm:$0xff]
        %880 = vmatprep.subr.mxu0 0.0
        %881 = vmatpush1.msra.mxu0 %v879
        %882 = vmatprep.subr.mxu0 0.0
        %883 = vmatpush1.msra.mxu0 %v878
        %884 = vmatprep.subr.mxu0 0.0
        %885 = vmatpush1.msra.mxu0 %v877
        %886 = vmatprep.subr.mxu0 0.0
        %887 = vmatpush1.msra.mxu0 %v876
        %888 = vmatprep.subr.mxu0 0.0
        %889 = vmatpush1.msra.mxu0 %v875
        %890 = vmatprep.subr.mxu0 0.0
        %891 = vmatpush1.msra.mxu0 %v874
        %892 = vmatprep.subr.mxu0 0.0
        %893 = vmatpush1.msra.mxu0 %v873
        %894 = vmatprep.subr.mxu0 0.0
        %895 = vmatpush1.msra.mxu0 %v872
        %896 = vmatprep.subr.mxu0 0.0
        %897 = vmatpush1.msra.mxu0 %v871
        %898 = vmatprep.subr.mxu0 0.0
        %899 = vmatpush1.msra.mxu0 %v870
        %900 = vmatprep.subr.mxu0 0.0
        %901 = vmatpush1.msra.mxu0 %v869
        %902 = vmatprep.subr.mxu0 0.0
        %903 = vmatpush1.msra.mxu0 %v868
        %904 = vmatprep.subr.mxu0 0.0
        %905 = vmatpush1.msra.mxu0 %v867
        %906 = vmatprep.subr.mxu0 0.0
        %907 = vmatpush1.msra.mxu0 %v866
        %908 = vmatprep.subr.mxu0 0.0
        %909 = vmatpush1.msra.mxu0 %v865
        %910 = vmatprep.subr.mxu0 0.0
        %911 = vmatpush1.msra.mxu0 %v864
        %912 = vmatprep.subr.mxu0 0.0
        %913 = vmatpush2.msra.mxu0 0.0
        %914 = vmatprep.subr.mxu0 0.0
        %915 = vmatpush2.msra.mxu0 0.0
        %916 = vmatprep.subr.mxu0 0.0
        %917 = vmatpush2.msra.mxu0 0.0
        %918 = vmatprep.subr.mxu0 0.0
        %919 = vmatpush2.msra.mxu0 0.0
        %920 = vmatprep.subr.mxu0 0.0
        %921 = vmatpush2.msra.mxu0 0.0
        %922 = vmatprep.subr.mxu0 0.0
        %923 = vmatpush2.msra.mxu0 0.0
        %924 = vmatprep.subr.mxu0 0.0
        %925 = vmatpush2.msra.mxu0 0.0
        %926 = vmatprep.subr.mxu0 0.0
        %927 = vmatpush2.msra.mxu0 0.0
        %928 = vmatprep.subr.mxu0 0.0
        %929 = vmatpush2.msra.mxu0 0.0
        %930 = vmatprep.subr.mxu0 0.0
        %931 = vmatpush2.msra.mxu0 0.0
        %932 = vmatprep.subr.mxu0 0.0
        %933 = vmatpush2.msra.mxu0 0.0
        %934 = vmatprep.subr.mxu0 0.0
        %935 = vmatpush2.msra.mxu0 0.0
        %936 = vmatprep.subr.mxu0 0.0
        %937 = vmatpush2.msra.mxu0 0.0
        %938 = vmatprep.subr.mxu0 0.0
        %939 = vmatpush2.msra.mxu0 0.0
        %940 = vmatprep.subr.mxu0 0.0
        %941 = vmatpush2.msra.mxu0 0.0
        %942 = vmatprep.subr.mxu0 0.0
        %943 = vmatpush2.msra.mxu0 0.0
        %944 = vmatprep.mubr.f32.mxu0 0.0
        %945 = vmatmul.mubr.f32.gmra.mxu0 %v656
        %v946 = vpop.f32.mrf.mxu0
        %v947 = vadd.f32 0.0, %v946
        %v948 = vpop.f32.mrf.mxu0
        %949 = vmatprep.mubr.f32.mxu0 0.0
        %950 = vmatmul.mubr.f32.gmra.mxu0 %v657
        %v951 = vpop.f32.mrf.mxu0
        %v952 = vadd.f32 0.0, %v951
        %v953 = vpop.f32.mrf.mxu0
        %954 = vmatprep.mubr.f32.mxu0 0.0
        %955 = vmatmul.mubr.f32.gmra.mxu0 %v658
        %v956 = vpop.f32.mrf.mxu0
        %v957 = vadd.f32 0.0, %v956
        %v958 = vpop.f32.mrf.mxu0
        %959 = vmatprep.mubr.f32.mxu0 0.0
        %960 = vmatmul.mubr.f32.gmra.mxu0 %v659
        %v961 = vpop.f32.mrf.mxu0
        %v962 = vadd.f32 0.0, %v961
        %v963 = vpop.f32.mrf.mxu0
        %964 = vdwg.mxu0
        %v965 = vadd.f32 %v845, %v947
        %v966 = vadd.f32 %v850, %v952
        %v967 = vadd.f32 %v855, %v957
        %v968 = vadd.f32 %v860, %v962
        %v969 = vlaneseq
        %v970 = vshrl.u32 %v969, 7
        %v971 = vsub.s32 3, %v970
        %v972 = vrot.slane %v265, %v971
        %v973 = vadd.f32 %v965, %v972
        %v974 = vadd.f32 %v966, %v972
        %v975 = vadd.f32 %v967, %v972
        %v976 = vadd.f32 %v968, %v972
        %v977 = vmax.f32 %v973, 0.0
        %v978 = vmax.f32 %v974, 0.0
        %v979 = vmax.f32 %v975, 0.0
        %v980 = vmax.f32 %v976, 0.0
        %v981 = vlaneseq
        %v982 = vshrl.u32 %v981, 7
        %v983 = vsub.s32 4, %v982
        %v984 = vrot.slane %v265, %v983
        %v985 = vmul.f32 %v977, %v984
        %v986 = vmul.f32 %v978, %v984
        %v987 = vmul.f32 %v979, %v984
        %v988 = vmul.f32 %v980, %v984
        %v989 = vlaneseq
        %v990 = vshrl.u32 %v989, 7
        %v991 = vsub.s32 5, %v990
        %v992 = vrot.slane %v265, %v991
        %v993 = vadd.f32 %v985, %v992
        %v994 = vadd.f32 %v986, %v992
        %v995 = vadd.f32 %v987, %v992
        %v996 = vadd.f32 %v988, %v992
        %v997 = vadd.f32 %v993, %v261
        %v998 = vadd.f32 %v994, %v262
        %v999 = vadd.f32 %v995, %v263
        %v1000 = vadd.f32 %v996, %v264
        %1001 = vst [vmem:[%s258] sm:$0xff] %v997
        %1002 = vst [vmem:[%s258 + $0x8] sm:$0xff] %v998
        %1003 = vst [vmem:[%s258 + $0x10] sm:$0xff] %v999
        %1004 = vst [vmem:[%s258 + $0x18] sm:$0xff] %v1000
        %s1005 = sand.u32 %s120, 1
        %s1006 = scalar_lea.sflag [#allocation4], %s1005
        %s1007 = sand.u32 %s120, 1
        %s1008 = smul.addr %s1007, 32
        %s1009 = scalar_lea.vmem [#allocation10], %s1008
        // Predicated region
        $region53: #{resblock_forward_packed.1} parent=35 // pred_check
          %p1010 = pneg %p130
        $region54: #{resblock_forward_packed.1} parent=35 // pred_check_branch
          %1012 = sbr.rel (%p1010) target = $region56
        $region55: #{resblock_forward_packed.1} parent=35 // pred_region
          %s1013 = smul.u32 2, %s23
          %s1015 = ssub.s32 512, 512
          %1016 = vsyncadd %s1006, %s1015
          %s1017 = smul.addr %s1013, 2
          %s1018 = smul.addr %s1017, 128
          %s1019 = scalar_lea.hbm %s4, %s1018
          %s1020 = sshll.u32 %s1009, 4
          %s1021 = int_to_ptr.vmem [resolvable:$true] %s1020
          %1026 = dma.vmem_to_hbm [thread:$0]  %s1021, 512, %s1019, %s1006, 128, 128, 8
        $region56: #{resblock_forward_packed.1} parent=35 // pred_fallthru
          _
      $region36: #{resblock_forward_packed.1} parent=5 // pred_fallthru
        _
      %p1027 = scmp.le.s32.totalorder 2, %s18
      // Predicated region
      $region57: #{resblock_forward_packed.1} parent=5 // pred_check
        %p1028 = pneg %p1027
      $region58: #{resblock_forward_packed.1} parent=5 // pred_check_branch
        %1030 = sbr.rel (%p1028) target = $region60
      $region59: #{resblock_forward_packed.1} parent=5 // pred_region
        %s1031 = ssub.s32 %s18, 2
        // Predicated region
        $region61: #{resblock_forward_packed.1} parent=59 // pred_check
          %p1032 = pneg %p136
        $region62: #{resblock_forward_packed.1} parent=59 // pred_check_branch
          %1034 = sbr.rel (%p1032) target = $region64
        $region63: #{resblock_forward_packed.1} parent=59 // pred_region
          %s1035 = sand.u32 %s121, 1
          %s1036 = scalar_lea.sflag [#allocation4], %s1035
          %s1037 = sand.u32 %s121, 1
          %s1038 = smul.addr %s1037, 32
          %s1039 = scalar_lea.vmem [#allocation10], %s1038
          %1040 = dma.done %s1036, 512
        $region64: #{resblock_forward_packed.1} parent=59 // pred_fallthru
          _
      $region60: #{resblock_forward_packed.1} parent=5 // pred_fallthru
        _
    $region6: #{resblock_forward_packed.1} parent=1 // loop_footer
      %s22 = sadd.s32 1, %s18
    $region7: #{resblock_forward_packed.1} parent=1 // loop_footer_branch
      %17 = sbr.rel target = $region3
    $region8: #{resblock_forward_packed.1} parent=1 // loop_exit
      _
    %1041 = vsyncpa [#allocation3], 1
    %s1042 = scalar_lea.sflag [#allocation3], 1
    %1043 = vsyncpa %s1042, 1
    %1044 = vsyncpa [#allocation6], 1
    %1045 = vsyncpa [#allocation9], 1
    %1046 = vsyncpa [#allocation4], 1
    %s1047 = scalar_lea.sflag [#allocation4], 1
    %1048 = vsyncpa %s1047, 1

</llo_original>
